<compile_context>
chip_gen: v5e
topology: v5e:2x2
jax: 0.10.0
libtpu: 0.0.40
codegen_flags: <defaults>
</compile_context>

<pallas_src>
import functools
from typing import NamedTuple

import jax
import jax.numpy as jnp
from jax.experimental import pallas as pl
from jax.experimental.pallas import tpu as pltpu

# config.num_debias_layers (not defined in the original snippet) -- fixed here.
NUM_DEBIAS_LAYERS = 2

LANE = 128        # lane width every feature dim is padded to
BIAS_ROWS = 16    # bias slot rows; 16 keeps every bf16 slab slice (16,128)-tile aligned


def _round_up(x, m):
    return (x + m - 1) // m * m


class PackedParams(NamedTuple):
    slab: jax.Array   # (n_layers * (width + BIAS_ROWS), width) bf16 parameter slab
    width: int        # lane-padded feature width (multiple of 128)
    n_layers: int
    input_dim: int
    embed_dim: int


def init_params(key, input_dim, hidden_dim, embed_dim, num_debias_layers):
    """Deterministic synthetic parameters. Returns list of (W, b), W is (in, out)."""
    dims = [input_dim] + [hidden_dim] * (num_debias_layers + 1) + [embed_dim]
    params = []
    for i in range(len(dims) - 1):
        key, kw, kb = jax.random.split(key, 3)
        w = jax.random.normal(kw, (dims[i], dims[i + 1]), jnp.float32) * 0.1
        b = jax.random.normal(kb, (dims[i + 1],), jnp.float32) * 0.01
        params.append((w, b))
    return params


def pack_params(params, input_dim):
    """One-time packing (hoisted out of the per-call path).

    All layers go into a single lane-dense bf16 slab:
      per layer: [width rows of W (zero padded) | BIAS_ROWS rows of bias].
    The bias is replicated across all BIAS_ROWS sublanes of its slot so the
    in-kernel bias add needs no broadcast_in_dim.
    """
    dims = [input_dim] + [w.shape[1] for w, _ in params]
    width = max(LANE, max(_round_up(d, LANE) for d in dims))
    blocks = []
    for w, b in params:
        wp = jnp.zeros((width, width), jnp.bfloat16)
        wp = wp.at[: w.shape[0], : w.shape[1]].set(w.astype(jnp.bfloat16))
        bp = jnp.zeros((BIAS_ROWS, width), jnp.bfloat16)
        bp = bp.at[:, : b.shape[0]].set(
            jnp.broadcast_to(b.astype(jnp.bfloat16)[None, :], (BIAS_ROWS, b.shape[0])))
        blocks += [wp, bp]
    slab = jnp.concatenate(blocks, axis=0)   # (n_layers*(width+BIAS_ROWS), width)
    return PackedParams(slab=slab, width=width, n_layers=len(params),
                        input_dim=input_dim, embed_dim=params[-1][0].shape[1])


def _mlp_softmax_kernel(x_ref, p_ref, o_ref, *, n_layers, blk, width,
                        n_groups, group_rows):
    """x_ref: (n_groups*group_rows, width) f32 lane-dense activations.
    p_ref : (n_layers*blk, width) bf16 parameter slab.
    o_ref : (n_groups*group_rows, width) f32 per-group softmax output."""
    rows = n_groups * group_rows
    h = x_ref[...]                                          # f32; padded cols are zero
    for l in range(n_layers):                               # statically unrolled
        off = l * blk                                       # multiple of 16 -> aligned slices
        w = p_ref[pl.ds(off, width), :]                     # (width, width) bf16
        h = jnp.dot(h.astype(jnp.bfloat16), w,
                    preferred_element_type=jnp.float32)     # MXU bf16, f32 accumulate
        # Bias rows are pre-replicated across the slot's sublanes -> plain add,
        # no broadcast_in_dim. (Alternative for odd row counts:
        # p_ref[pl.ds(off + width, rows, stride=0), :] sublane-broadcast load.)
        nb = min(rows, BIAS_ROWS)
        b = p_ref[pl.ds(off + width, nb), :].astype(jnp.float32)
        if rows > nb:
            b = jnp.tile(b, (-(-rows // nb), 1))[:rows, :]
        h = h + b
        if l < n_layers - 1:                                # ReLU after all but last layer
            h = jnp.maximum(h, 0.0)

    # Softmax along dim 0 of each independent group, per output column, in f32.
    # Each group is a sublane-aligned 2-D slice, so unroll a tiny static loop.
    for g in range(n_groups):
        lo = g * group_rows
        hg = h[lo:lo + group_rows, :]
        m = jnp.max(hg, axis=0, keepdims=True)
        e = jnp.exp(hg - m)
        s = jnp.sum(e, axis=0, keepdims=True)
        o_ref[lo:lo + group_rows, :] = e * pl.reciprocal(s, approx=True)


def bias_mitigation_net(x, packed: PackedParams):
    """Forward pass.

    x: (batch, input_dim)             -> softmax over dim 0 (the PyTorch module), or
       (n_groups, batch, input_dim)   -> G independent problems in one kernel launch
                                         (amortizes the weight pushes across G*batch
                                         MXU rows; softmax is per group).
    """
    if x.ndim == 2:
        n_groups, batch = 1, x.shape[0]
        x2 = x
    else:
        n_groups, batch = x.shape[0], x.shape[1]
        x2 = x.reshape(n_groups * batch, x.shape[-1])
    rows = n_groups * batch
    width, blk = packed.width, packed.width + BIAS_ROWS

    # Lane-dense f32 activation slab (padded columns are zero).
    # TODO(synk): if x's shape is stable across calls, hoist this pad/cast out of
    # the per-call path too (it is the only per-call host-side work left).
    xp = jnp.zeros((rows, width), jnp.float32).at[:, : x2.shape[1]].set(
        x2.astype(jnp.float32))

    kernel = functools.partial(
        _mlp_softmax_kernel, n_layers=packed.n_layers, blk=blk, width=width,
        n_groups=n_groups, group_rows=batch)

    vmem = pltpu.MemorySpace.VMEM
    # Gridless single invocation (per review: ~0.35us/grid-step overhead would
    # exceed the entire compute at these sizes).
    out = pl.pallas_call(
        kernel,
        out_shape=jax.ShapeDtypeStruct((rows, width), jnp.float32),
        in_specs=[pl.BlockSpec(memory_space=vmem),
                  pl.BlockSpec(memory_space=vmem)],
        out_specs=pl.BlockSpec(memory_space=vmem),
    )(xp, packed.slab)

    # Slice off lane padding OUTSIDE the kernel (keeps in-kernel stores unmasked).
    out = out[:, : packed.embed_dim]
    if x.ndim == 3:
        out = out.reshape(n_groups, batch, packed.embed_dim)
    return out


def _reference(x, params):
    """Pure-JAX reference mimicking the kernel numerics (bf16 MXU operands,
    f32 accumulation, f32 softmax over dim 0)."""
    h = x
    n = len(params)
    for i, (w, b) in enumerate(params):
        h = jnp.dot(h.astype(jnp.bfloat16), w.astype(jnp.bfloat16),
                    preferred_element_type=jnp.float32)
        h = h + b.astype(jnp.bfloat16).astype(jnp.float32)
        if i < n - 1:
            h = jnp.maximum(h, 0.0)
    return jax.nn.softmax(h, axis=0)


if __name__ == "__main__":
    input_dim, hidden_dim, embed_dim = 16, 32, 16
    batch = 8

    key = jax.random.PRNGKey(0)
    kx, kp, kg = jax.random.split(key, 3)
    params = init_params(kp, input_dim, hidden_dim, embed_dim, NUM_DEBIAS_LAYERS)
    packed = pack_params(params, input_dim)      # packed ONCE, reused every call

    # Spec-faithful case: one batch, softmax over dim 0.
    x = jax.random.normal(kx, (batch, input_dim), jnp.float32)
    out = jax.block_until_ready(bias_mitigation_net(x, packed))
    ref = _reference(x, params)
    assert out.shape == (batch, embed_dim)
    assert jnp.allclose(out, ref, atol=2e-3, rtol=2e-3)

    # Throughput case: 4 independent batches share one kernel launch.
    G = 4
    xg = jax.random.normal(kg, (G, batch, input_dim), jnp.float32)
    outg = jax.block_until_ready(bias_mitigation_net(xg, packed))
    refg = jax.vmap(_reference, in_axes=(0, None))(xg, params)
    assert outg.shape == (G, batch, embed_dim)
    assert jnp.allclose(outg, refg, atol=2e-3, rtol=2e-3)

    print("KERNEL_OK")
</pallas_src>

<mosaic_0001>
module attributes {stable_mosaic.version = 11 : i64} {
  func.func @_mlp_softmax_kernel(%arg0: memref<8x128xf32, #tpu.memory_space<vmem>>, %arg1: memref<576x128xbf16, #tpu.memory_space<vmem>>, %arg2: memref<8x128xf32, #tpu.memory_space<vmem>>) attributes {dimension_semantics = [], scalar_prefetch = 0 : i64, scratch_operands = 0 : i64, tpu.core_type = #tpu.core_type<tc>} {
    %c0 = arith.constant 0 : index
    %c0_0 = arith.constant 0 : index
    %0 = vector.load %arg0[%c0, %c0_0] : memref<8x128xf32, #tpu.memory_space<vmem>>, vector<8x128xf32>
    %c0_1 = arith.constant 0 : index
    %c0_2 = arith.constant 0 : index
    %1 = vector.load %arg1[%c0_1, %c0_2] : memref<576x128xbf16, #tpu.memory_space<vmem>>, vector<128x128xbf16>
    %2 = arith.truncf %0 : vector<8x128xf32> to vector<8x128xbf16>
    %cst = arith.constant dense<0.000000e+00> : vector<8x128xf32>
    %3 = tpu.matmul %2, %1, %cst {dimension_numbers = #tpu.dot_dimension_numbers<[1], [0], [0], [1], [0, 0, 1, 1], [], []>} : vector<8x128xbf16>, vector<128x128xbf16>, vector<8x128xf32> -> vector<8x128xf32>
    %c128 = arith.constant 128 : index
    %c0_3 = arith.constant 0 : index
    %4 = vector.load %arg1[%c128, %c0_3] : memref<576x128xbf16, #tpu.memory_space<vmem>>, vector<8x128xbf16>
    %5 = arith.extf %4 : vector<8x128xbf16> to vector<8x128xf32>
    %6 = arith.addf %3, %5 : vector<8x128xf32>
    %cst_4 = arith.constant 0.000000e+00 : f32
    %7 = vector.broadcast %cst_4 : f32 to vector<8x128xf32>
    %8 = arith.maximumf %6, %7 : vector<8x128xf32>
    %c144 = arith.constant 144 : index
    %c0_5 = arith.constant 0 : index
    %9 = vector.load %arg1[%c144, %c0_5] : memref<576x128xbf16, #tpu.memory_space<vmem>>, vector<128x128xbf16>
    %10 = arith.truncf %8 : vector<8x128xf32> to vector<8x128xbf16>
    %cst_6 = arith.constant dense<0.000000e+00> : vector<8x128xf32>
    %11 = tpu.matmul %10, %9, %cst_6 {dimension_numbers = #tpu.dot_dimension_numbers<[1], [0], [0], [1], [0, 0, 1, 1], [], []>} : vector<8x128xbf16>, vector<128x128xbf16>, vector<8x128xf32> -> vector<8x128xf32>
    %c272 = arith.constant 272 : index
    %c0_7 = arith.constant 0 : index
    %12 = vector.load %arg1[%c272, %c0_7] : memref<576x128xbf16, #tpu.memory_space<vmem>>, vector<8x128xbf16>
    %13 = arith.extf %12 : vector<8x128xbf16> to vector<8x128xf32>
    %14 = arith.addf %11, %13 : vector<8x128xf32>
    %cst_8 = arith.constant 0.000000e+00 : f32
    %15 = vector.broadcast %cst_8 : f32 to vector<8x128xf32>
    %16 = arith.maximumf %14, %15 : vector<8x128xf32>
    %c288 = arith.constant 288 : index
    %c0_9 = arith.constant 0 : index
    %17 = vector.load %arg1[%c288, %c0_9] : memref<576x128xbf16, #tpu.memory_space<vmem>>, vector<128x128xbf16>
    %18 = arith.truncf %16 : vector<8x128xf32> to vector<8x128xbf16>
    %cst_10 = arith.constant dense<0.000000e+00> : vector<8x128xf32>
    %19 = tpu.matmul %18, %17, %cst_10 {dimension_numbers = #tpu.dot_dimension_numbers<[1], [0], [0], [1], [0, 0, 1, 1], [], []>} : vector<8x128xbf16>, vector<128x128xbf16>, vector<8x128xf32> -> vector<8x128xf32>
    %c416 = arith.constant 416 : index
    %c0_11 = arith.constant 0 : index
    %20 = vector.load %arg1[%c416, %c0_11] : memref<576x128xbf16, #tpu.memory_space<vmem>>, vector<8x128xbf16>
    %21 = arith.extf %20 : vector<8x128xbf16> to vector<8x128xf32>
    %22 = arith.addf %19, %21 : vector<8x128xf32>
    %cst_12 = arith.constant 0.000000e+00 : f32
    %23 = vector.broadcast %cst_12 : f32 to vector<8x128xf32>
    %24 = arith.maximumf %22, %23 : vector<8x128xf32>
    %c432 = arith.constant 432 : index
    %c0_13 = arith.constant 0 : index
    %25 = vector.load %arg1[%c432, %c0_13] : memref<576x128xbf16, #tpu.memory_space<vmem>>, vector<128x128xbf16>
    %26 = arith.truncf %24 : vector<8x128xf32> to vector<8x128xbf16>
    %cst_14 = arith.constant dense<0.000000e+00> : vector<8x128xf32>
    %27 = tpu.matmul %26, %25, %cst_14 {dimension_numbers = #tpu.dot_dimension_numbers<[1], [0], [0], [1], [0, 0, 1, 1], [], []>} : vector<8x128xbf16>, vector<128x128xbf16>, vector<8x128xf32> -> vector<8x128xf32>
    %c560 = arith.constant 560 : index
    %c0_15 = arith.constant 0 : index
    %28 = vector.load %arg1[%c560, %c0_15] : memref<576x128xbf16, #tpu.memory_space<vmem>>, vector<8x128xbf16>
    %29 = arith.extf %28 : vector<8x128xbf16> to vector<8x128xf32>
    %30 = arith.addf %27, %29 : vector<8x128xf32>
    %cst_16 = arith.constant dense<0xFF800000> : vector<128xf32>
    %31 = vector.multi_reduction <maximumf>, %30, %cst_16 [0] : vector<8x128xf32> to vector<128xf32>
    %32 = vector.shape_cast %31 : vector<128xf32> to vector<1x128xf32>
    %33 = vector.broadcast %32 : vector<1x128xf32> to vector<8x128xf32>
    %34 = arith.subf %30, %33 : vector<8x128xf32>
    %35 = math.exp %34 : vector<8x128xf32>
    %cst_17 = arith.constant dense<0.000000e+00> : vector<128xf32>
    %36 = vector.multi_reduction <add>, %35, %cst_17 [0] : vector<8x128xf32> to vector<128xf32>
    %37 = vector.shape_cast %36 : vector<128xf32> to vector<1x128xf32>
    %38 = tpu.reciprocal %37 {approx = true} : vector<1x128xf32> -> vector<1x128xf32>
    %39 = vector.broadcast %38 : vector<1x128xf32> to vector<8x128xf32>
    %40 = arith.mulf %35, %39 : vector<8x128xf32>
    %c0_18 = arith.constant 0 : index
    %c0_19 = arith.constant 0 : index
    %41 = vector.load %arg2[%c0_18, %c0_19] : memref<8x128xf32, #tpu.memory_space<vmem>>, vector<8x128xf32>
    tpu.vector_store %arg2[%c0_18, %c0_19], %40 {strides = array<i32>} : memref<8x128xf32, #tpu.memory_space<vmem>>, vector<8x128xf32>,
    return
  }
}

</mosaic_0001>

<llo_original>
// kernel: tpu_custom_call.1
$region0: #{tpu_custom_call.1}
  #allocation0 [shape = 'u32[]', space=smem, size = 0x4, offset = 0x4, fixed_abs, tag = 'smem constant byte address 0x4 - core index']
  #allocation1 [shape = 'u32[72,128]{1,0:T(1,128)}', space=vmem, size = 0x9000, scoped, tag = 'internal scratch']
  %s0 = inlined_call_operand.hbm [shape: f32[8,128], index: 0, kind: input, shape index: {}]
  %s1 = inlined_call_operand.hbm [shape: bf16[576,128], index: 1, kind: input, shape index: {}]
  %s2 = inlined_call_operand.hbm [shape: f32[8,128], index: 2, kind: output, shape index: {}]
  %s3 = sld [smem:[#allocation0]]
  $region26: #{tpu_custom_call.1} parent=0
    _
  %s5 = ssub.s32 1, %s3
  %s6 = scalar_select 0, %s5, %s3
  $region1: #{tpu_custom_call.1} parent=0
    #allocation2 [shape = 'u8[4096]{0}', space=vmem, size = 0x1000, scoped, tag = 'input window, operand 0, single buffered']
    #allocation3 [shape = 's32[1]{0}', space=sflag, size = 0x4, scoped, tag = 'scoped memory for tpu_custom_call.1']
    #allocation4 [shape = 's32[1]{0}', space=sflag, size = 0x4, scoped, tag = 'scoped memory for tpu_custom_call.1']
    #allocation5 [shape = 'u8[147456]{0}', space=vmem, size = 0x24000, scoped, tag = 'input window, operand 1, single buffered']
    #allocation6 [shape = 's32[1]{0}', space=sflag, size = 0x4, scoped, tag = 'scoped memory for tpu_custom_call.1']
    #allocation7 [shape = 'u8[4096]{0}', space=vmem, size = 0x1000, scoped, tag = 'output window, operand 0, single buffered']
    %7 = vsyncpa [#allocation3], 0
    %8 = vsyncpa [#allocation6], 0
    %9 = vsyncpa [#allocation4], 0
    // Predicated region
    $region2: #{tpu_custom_call.1} parent=1 // pred_check
      _
    $region3: #{tpu_custom_call.1} parent=1 // pred_check_branch
      %11 = sbr.rel (0) target = $region5
    $region4: #{tpu_custom_call.1} parent=1 // pred_region
      %13 = vsyncadd [#allocation3], 0
      %s15 = sshll.u32 %s0, 4
      %s16 = int_to_ptr.hbm [resolvable:$true] %s15
      %s17 = sshll.u32 [#allocation2], 4
      %s18 = int_to_ptr.vmem [resolvable:$true] %s17
      %20 = dma.hbm_to_vmem [thread:$0]  %s16, 128, %s18, [#allocation3]
    $region5: #{tpu_custom_call.1} parent=1 // pred_fallthru
      _
    // Predicated region
    $region6: #{tpu_custom_call.1} parent=1 // pred_check
      _
    $region7: #{tpu_custom_call.1} parent=1 // pred_check_branch
      %22 = sbr.rel (0) target = $region9
    $region8: #{tpu_custom_call.1} parent=1 // pred_region
      %24 = vsyncadd [#allocation6], 0
      %s25 = sshll.u32 %s1, 4
      %s26 = int_to_ptr.hbm [resolvable:$true] %s25
      %s27 = sshll.u32 [#allocation5], 4
      %s28 = int_to_ptr.vmem [resolvable:$true] %s27
      %33 = dma.hbm_to_vmem [thread:$0]  %s26, 4608, %s28, [#allocation6], 64, 64, 4
    $region9: #{tpu_custom_call.1} parent=1 // pred_fallthru
      _
    // Predicated region
    $region10: #{tpu_custom_call.1} parent=1 // pred_check
      _
    $region11: #{tpu_custom_call.1} parent=1 // pred_check_branch
      %35 = sbr.rel (0) target = $region13
    $region12: #{tpu_custom_call.1} parent=1 // pred_region
      %37 = dma.done [#allocation3], 128
    $region13: #{tpu_custom_call.1} parent=1 // pred_fallthru
      _
    // Predicated region
    $region14: #{tpu_custom_call.1} parent=1 // pred_check
      _
    $region15: #{tpu_custom_call.1} parent=1 // pred_check_branch
      %39 = sbr.rel (0) target = $region17
    $region16: #{tpu_custom_call.1} parent=1 // pred_region
      %41 = dma.done [#allocation6], 4608
    $region17: #{tpu_custom_call.1} parent=1 // pred_fallthru
      _
    %v42 = vld [vmem:[#allocation2] sm:$0xff]
    %v43 = vld [vmem:[#allocation5] sm:$0xf]
    %v44 = vld [vmem:[#allocation5 + $0x4] sm:$0xf]
    %v45 = vld [vmem:[#allocation5 + $0x8] sm:$0xf]
    %v46 = vld [vmem:[#allocation5 + $0xc] sm:$0xf]
    %v47 = vld [vmem:[#allocation5 + $0x10] sm:$0xf]
    %v48 = vld [vmem:[#allocation5 + $0x14] sm:$0xf]
    %v49 = vld [vmem:[#allocation5 + $0x18] sm:$0xf]
    %v50 = vld [vmem:[#allocation5 + $0x1c] sm:$0xf]
    %v51 = vld [vmem:[#allocation5 + $0x20] sm:$0xf]
    %v52 = vld [vmem:[#allocation5 + $0x24] sm:$0xf]
    %v53 = vld [vmem:[#allocation5 + $0x28] sm:$0xf]
    %v54 = vld [vmem:[#allocation5 + $0x2c] sm:$0xf]
    %v55 = vld [vmem:[#allocation5 + $0x30] sm:$0xf]
    %v56 = vld [vmem:[#allocation5 + $0x34] sm:$0xf]
    %v57 = vld [vmem:[#allocation5 + $0x38] sm:$0xf]
    %v58 = vld [vmem:[#allocation5 + $0x3c] sm:$0xf]
    %v59 = vpack.c.bf16 %v42, %v42
    %v60 = vld [vmem:[#allocation5 + $0x40] sm:$0xf]
    %v61 = vunpack.c.l.bf16 %v60
    %v78 = vunpack.c.l.b16 %v43
    %v79 = vunpack.c.l.b16 %v44
    %v80 = vunpack.c.l.b16 %v45
    %v81 = vunpack.c.l.b16 %v46
    %v82 = vunpack.c.l.b16 %v47
    %v83 = vunpack.c.l.b16 %v48
    %v84 = vunpack.c.l.b16 %v49
    %v85 = vunpack.c.l.b16 %v50
    %v86 = vunpack.c.l.b16 %v51
    %v87 = vunpack.c.l.b16 %v52
    %v88 = vunpack.c.l.b16 %v53
    %v89 = vunpack.c.l.b16 %v54
    %v90 = vunpack.c.l.b16 %v55
    %v91 = vunpack.c.l.b16 %v56
    %v92 = vunpack.c.l.b16 %v57
    %v93 = vunpack.c.l.b16 %v58
    %v94 = vpack.c.b16 %v79, %v78
    %v95 = vpack.c.b16 %v81, %v80
    %v96 = vpack.c.b16 %v83, %v82
    %v97 = vpack.c.b16 %v85, %v84
    %v98 = vpack.c.b16 %v87, %v86
    %v99 = vpack.c.b16 %v89, %v88
    %v100 = vpack.c.b16 %v91, %v90
    %v101 = vpack.c.b16 %v93, %v92
    %110 = vmatpush.bf16.msra.mxu0 %v101
    %111 = vmatpush.bf16.msra.mxu0 %v100
    %112 = vmatpush.bf16.msra.mxu0 %v99
    %113 = vmatpush.bf16.msra.mxu0 %v98
    %114 = vmatpush.bf16.msra.mxu0 %v97
    %115 = vmatpush.bf16.msra.mxu0 %v96
    %116 = vmatpush.bf16.msra.mxu0 %v95
    %117 = vmatpush.bf16.msra.mxu0 %v94
    %118 = vmatmul.bf16.gmra.mxu0 %v59
    %v119 = vpop.f32.mrf.mxu0
    %v120 = vadd.f32 %v61, %v119
    %v121 = vpop.f32.mrf.mxu0
    %122 = vdwg.mxu0
    %v123 = vmax.f32 %v120, 0.0
    %v124 = vld [vmem:[#allocation5 + $0x48] sm:$0xf]
    %v125 = vld [vmem:[#allocation5 + $0x4c] sm:$0xf]
    %v126 = vld [vmem:[#allocation5 + $0x50] sm:$0xf]
    %v127 = vld [vmem:[#allocation5 + $0x54] sm:$0xf]
    %v128 = vld [vmem:[#allocation5 + $0x58] sm:$0xf]
    %v129 = vld [vmem:[#allocation5 + $0x5c] sm:$0xf]
    %v130 = vld [vmem:[#allocation5 + $0x60] sm:$0xf]
    %v131 = vld [vmem:[#allocation5 + $0x64] sm:$0xf]
    %v132 = vld [vmem:[#allocation5 + $0x68] sm:$0xf]
    %v133 = vld [vmem:[#allocation5 + $0x6c] sm:$0xf]
    %v134 = vld [vmem:[#allocation5 + $0x70] sm:$0xf]
    %v135 = vld [vmem:[#allocation5 + $0x74] sm:$0xf]
    %v136 = vld [vmem:[#allocation5 + $0x78] sm:$0xf]
    %v137 = vld [vmem:[#allocation5 + $0x7c] sm:$0xf]
    %v138 = vld [vmem:[#allocation5 + $0x80] sm:$0xf]
    %v139 = vld [vmem:[#allocation5 + $0x84] sm:$0xf]
    %v140 = vpack.c.bf16 %v123, %v123
    %v141 = vld [vmem:[#allocation5 + $0x88] sm:$0xf]
    %v142 = vunpack.c.l.bf16 %v141
    %v159 = vunpack.c.l.b16 %v124
    %v160 = vunpack.c.l.b16 %v125
    %v161 = vunpack.c.l.b16 %v126
    %v162 = vunpack.c.l.b16 %v127
    %v163 = vunpack.c.l.b16 %v128
    %v164 = vunpack.c.l.b16 %v129
    %v165 = vunpack.c.l.b16 %v130
    %v166 = vunpack.c.l.b16 %v131
    %v167 = vunpack.c.l.b16 %v132
    %v168 = vunpack.c.l.b16 %v133
    %v169 = vunpack.c.l.b16 %v134
    %v170 = vunpack.c.l.b16 %v135
    %v171 = vunpack.c.l.b16 %v136
    %v172 = vunpack.c.l.b16 %v137
    %v173 = vunpack.c.l.b16 %v138
    %v174 = vunpack.c.l.b16 %v139
    %v175 = vpack.c.b16 %v160, %v159
    %v176 = vpack.c.b16 %v162, %v161
    %v177 = vpack.c.b16 %v164, %v163
    %v178 = vpack.c.b16 %v166, %v165
    %v179 = vpack.c.b16 %v168, %v167
    %v180 = vpack.c.b16 %v170, %v169
    %v181 = vpack.c.b16 %v172, %v171
    %v182 = vpack.c.b16 %v174, %v173
    %191 = vmatpush.bf16.msra.mxu0 %v182
    %192 = vmatpush.bf16.msra.mxu0 %v181
    %193 = vmatpush.bf16.msra.mxu0 %v180
    %194 = vmatpush.bf16.msra.mxu0 %v179
    %195 = vmatpush.bf16.msra.mxu0 %v178
    %196 = vmatpush.bf16.msra.mxu0 %v177
    %197 = vmatpush.bf16.msra.mxu0 %v176
    %198 = vmatpush.bf16.msra.mxu0 %v175
    %199 = vmatmul.bf16.gmra.mxu0 %v140
    %v200 = vpop.f32.mrf.mxu0
    %v201 = vadd.f32 %v142, %v200
    %v202 = vpop.f32.mrf.mxu0
    %203 = vdwg.mxu0
    %v204 = vmax.f32 %v201, 0.0
    %v205 = vld [vmem:[#allocation5 + $0x90] sm:$0xf]
    %v206 = vld [vmem:[#allocation5 + $0x94] sm:$0xf]
    %v207 = vld [vmem:[#allocation5 + $0x98] sm:$0xf]
    %v208 = vld [vmem:[#allocation5 + $0x9c] sm:$0xf]
    %v209 = vld [vmem:[#allocation5 + $0xa0] sm:$0xf]
    %v210 = vld [vmem:[#allocation5 + $0xa4] sm:$0xf]
    %v211 = vld [vmem:[#allocation5 + $0xa8] sm:$0xf]
    %v212 = vld [vmem:[#allocation5 + $0xac] sm:$0xf]
    %v213 = vld [vmem:[#allocation5 + $0xb0] sm:$0xf]
    %v214 = vld [vmem:[#allocation5 + $0xb4] sm:$0xf]
    %v215 = vld [vmem:[#allocation5 + $0xb8] sm:$0xf]
    %v216 = vld [vmem:[#allocation5 + $0xbc] sm:$0xf]
    %v217 = vld [vmem:[#allocation5 + $0xc0] sm:$0xf]
    %v218 = vld [vmem:[#allocation5 + $0xc4] sm:$0xf]
    %v219 = vld [vmem:[#allocation5 + $0xc8] sm:$0xf]
    %v220 = vld [vmem:[#allocation5 + $0xcc] sm:$0xf]
    %v221 = vpack.c.bf16 %v204, %v204
    %v222 = vld [vmem:[#allocation5 + $0xd0] sm:$0xf]
    %v223 = vunpack.c.l.bf16 %v222
    %v240 = vunpack.c.l.b16 %v205
    %v241 = vunpack.c.l.b16 %v206
    %v242 = vunpack.c.l.b16 %v207
    %v243 = vunpack.c.l.b16 %v208
    %v244 = vunpack.c.l.b16 %v209
    %v245 = vunpack.c.l.b16 %v210
    %v246 = vunpack.c.l.b16 %v211
    %v247 = vunpack.c.l.b16 %v212
    %v248 = vunpack.c.l.b16 %v213
    %v249 = vunpack.c.l.b16 %v214
    %v250 = vunpack.c.l.b16 %v215
    %v251 = vunpack.c.l.b16 %v216
    %v252 = vunpack.c.l.b16 %v217
    %v253 = vunpack.c.l.b16 %v218
    %v254 = vunpack.c.l.b16 %v219
    %v255 = vunpack.c.l.b16 %v220
    %v256 = vpack.c.b16 %v241, %v240
    %v257 = vpack.c.b16 %v243, %v242
    %v258 = vpack.c.b16 %v245, %v244
    %v259 = vpack.c.b16 %v247, %v246
    %v260 = vpack.c.b16 %v249, %v248
    %v261 = vpack.c.b16 %v251, %v250
    %v262 = vpack.c.b16 %v253, %v252
    %v263 = vpack.c.b16 %v255, %v254
    %272 = vmatpush.bf16.msra.mxu0 %v263
    %273 = vmatpush.bf16.msra.mxu0 %v262
    %274 = vmatpush.bf16.msra.mxu0 %v261
    %275 = vmatpush.bf16.msra.mxu0 %v260
    %276 = vmatpush.bf16.msra.mxu0 %v259
    %277 = vmatpush.bf16.msra.mxu0 %v258
    %278 = vmatpush.bf16.msra.mxu0 %v257
    %279 = vmatpush.bf16.msra.mxu0 %v256
    %280 = vmatmul.bf16.gmra.mxu0 %v221
    %v281 = vpop.f32.mrf.mxu0
    %v282 = vadd.f32 %v223, %v281
    %v283 = vpop.f32.mrf.mxu0
    %284 = vdwg.mxu0
    %v285 = vmax.f32 %v282, 0.0
    %v286 = vld [vmem:[#allocation5 + $0xd8] sm:$0xf]
    %v287 = vld [vmem:[#allocation5 + $0xdc] sm:$0xf]
    %v288 = vld [vmem:[#allocation5 + $0xe0] sm:$0xf]
    %v289 = vld [vmem:[#allocation5 + $0xe4] sm:$0xf]
    %v290 = vld [vmem:[#allocation5 + $0xe8] sm:$0xf]
    %v291 = vld [vmem:[#allocation5 + $0xec] sm:$0xf]
    %v292 = vld [vmem:[#allocation5 + $0xf0] sm:$0xf]
    %v293 = vld [vmem:[#allocation5 + $0xf4] sm:$0xf]
    %v294 = vld [vmem:[#allocation5 + $0xf8] sm:$0xf]
    %v295 = vld [vmem:[#allocation5 + $0xfc] sm:$0xf]
    %v296 = vld [vmem:[#allocation5 + $0x100] sm:$0xf]
    %v297 = vld [vmem:[#allocation5 + $0x104] sm:$0xf]
    %v298 = vld [vmem:[#allocation5 + $0x108] sm:$0xf]
    %v299 = vld [vmem:[#allocation5 + $0x10c] sm:$0xf]
    %v300 = vld [vmem:[#allocation5 + $0x110] sm:$0xf]
    %v301 = vld [vmem:[#allocation5 + $0x114] sm:$0xf]
    %v302 = vpack.c.bf16 %v285, %v285
    %v303 = vld [vmem:[#allocation5 + $0x118] sm:$0xf]
    %v304 = vunpack.c.l.bf16 %v303
    %v321 = vunpack.c.l.b16 %v286
    %v322 = vunpack.c.l.b16 %v287
    %v323 = vunpack.c.l.b16 %v288
    %v324 = vunpack.c.l.b16 %v289
    %v325 = vunpack.c.l.b16 %v290
    %v326 = vunpack.c.l.b16 %v291
    %v327 = vunpack.c.l.b16 %v292
    %v328 = vunpack.c.l.b16 %v293
    %v329 = vunpack.c.l.b16 %v294
    %v330 = vunpack.c.l.b16 %v295
    %v331 = vunpack.c.l.b16 %v296
    %v332 = vunpack.c.l.b16 %v297
    %v333 = vunpack.c.l.b16 %v298
    %v334 = vunpack.c.l.b16 %v299
    %v335 = vunpack.c.l.b16 %v300
    %v336 = vunpack.c.l.b16 %v301
    %v337 = vpack.c.b16 %v322, %v321
    %v338 = vpack.c.b16 %v324, %v323
    %v339 = vpack.c.b16 %v326, %v325
    %v340 = vpack.c.b16 %v328, %v327
    %v341 = vpack.c.b16 %v330, %v329
    %v342 = vpack.c.b16 %v332, %v331
    %v343 = vpack.c.b16 %v334, %v333
    %v344 = vpack.c.b16 %v336, %v335
    %353 = vmatpush.bf16.msra.mxu0 %v344
    %354 = vmatpush.bf16.msra.mxu0 %v343
    %355 = vmatpush.bf16.msra.mxu0 %v342
    %356 = vmatpush.bf16.msra.mxu0 %v341
    %357 = vmatpush.bf16.msra.mxu0 %v340
    %358 = vmatpush.bf16.msra.mxu0 %v339
    %359 = vmatpush.bf16.msra.mxu0 %v338
    %360 = vmatpush.bf16.msra.mxu0 %v337
    %361 = vmatmul.bf16.gmra.mxu0 %v302
    %v362 = vpop.f32.mrf.mxu0
    %v363 = vadd.f32 %v304, %v362
    %v364 = vpop.f32.mrf.mxu0
    %365 = vdwg.mxu0
    %v366 = vrot.slane %v363, 4
    %v367 = vmax.f32 %v363, %v366
    %v368 = vrot.slane %v367, 2
    %v369 = vmax.f32 %v367, %v368
    %v370 = vrot.slane %v369, 1
    %v371 = vmax.f32 %v369, %v370
    %v372 = vsub.f32 %v363, %v371
    %v373 = vmul.f32 %v372, 1.442695
    %v374 = vpow.pop %v373
    %v375 = vrot.slane %v374, 4
    %v376 = vadd.f32 %v374, %v375
    %v377 = vrot.slane %v376, 2
    %v378 = vadd.f32 %v376, %v377
    %v379 = vrot.slane %v378, 1
    %v380 = vadd.f32 %v378, %v379
    %v381 = vrcp.pop %v380
    %v382 = vmul.f32 %v374, %v381
    %383 = vst [vmem:[#allocation7] sm:$0xff] %v382
    // Predicated region
    $region18: #{tpu_custom_call.1} parent=1 // pred_check
      _
    $region19: #{tpu_custom_call.1} parent=1 // pred_check_branch
      %385 = sbr.rel (0) target = $region21
    $region20: #{tpu_custom_call.1} parent=1 // pred_region
      %387 = vsyncadd [#allocation4], 0
      %s389 = sshll.u32 [#allocation7], 4
      %s390 = int_to_ptr.vmem [resolvable:$true] %s389
      %s391 = sshll.u32 %s2, 4
      %s392 = int_to_ptr.hbm [resolvable:$true] %s391
      %394 = dma.vmem_to_hbm [thread:$0]  %s390, 128, %s392, [#allocation4]
    $region21: #{tpu_custom_call.1} parent=1 // pred_fallthru
      _
    // Predicated region
    $region22: #{tpu_custom_call.1} parent=1 // pred_check
      _
    $region23: #{tpu_custom_call.1} parent=1 // pred_check_branch
      %396 = sbr.rel (0) target = $region25
    $region24: #{tpu_custom_call.1} parent=1 // pred_region
      %398 = dma.done [#allocation4], 128
    $region25: #{tpu_custom_call.1} parent=1 // pred_fallthru
      _
    %399 = vsyncpa [#allocation3], 1
    %400 = vsyncpa [#allocation6], 1
    %401 = vsyncpa [#allocation4], 1

</llo_original>
